<compile_context>
chip_gen: v7x
topology: tpu7x:2x2x1
jax: 0.10.0
libtpu: 0.0.40
codegen_flags: <defaults>
</compile_context>

<pallas_src>
import jax
import jax.numpy as jnp
from jax.experimental import pallas as pl
from jax.experimental.pallas import tpu as pltpu

NUM_CLASSES = 10
IN_FEATURES = 24

# Batch-tile (lane) width per grid step: multiple of 128, amortizes the ~0.35us
# per-step overhead while keeping the double-buffered VMEM footprint ~1 MiB.
_TB_MAX = 2048


def _linear_t_kernel(w_ref, b_ref, zt_ref, ot_ref):
    # w_ref:  (10, 24)   VMEM, resident across the whole grid
    # b_ref:  (10, 1)    VMEM, resident
    # zt_ref: (24, TB)   VMEM, batch-in-lanes activation tile (lane-dense load)
    # ot_ref: (10, TB)   VMEM, lane-dense output tile (full-lane stores)
    ot_ref[...] = (
        jnp.dot(w_ref[...], zt_ref[...], preferred_element_type=jnp.float32)
        + b_ref[...]
    ).astype(ot_ref.dtype)


def classifier_forward_t(z_t, weight, bias):
    """Fast path: z_t is (24, B) batch-in-lanes (f32 or bf16).

    weight: (10, 24) f32 (PyTorch nn.Linear layout, NOT transposed)
    bias:   (10,)    f32
    Returns logits_t: (10, B) f32.
    """
    k, b_total = z_t.shape
    assert k == IN_FEATURES, f"expected {IN_FEATURES} input features, got {k}"

    # TB either equals the full batch (small B) or is a multiple of 128,
    # so the BlockSpec (8,128)/full-dim rule is always satisfied.
    tb = b_total if b_total <= _TB_MAX else _TB_MAX
    grid = (pl.cdiv(b_total, tb),)

    w = weight.astype(z_t.dtype)                       # 240 elems; enables bf16 MXU path
    b2 = bias.astype(jnp.float32).reshape(NUM_CLASSES, 1)

    return pl.pallas_call(
        _linear_t_kernel,
        out_shape=jax.ShapeDtypeStruct((NUM_CLASSES, b_total), jnp.float32),
        grid=grid,
        in_specs=[
            pl.BlockSpec((NUM_CLASSES, IN_FEATURES), lambda i: (0, 0)),  # weight (resident)
            pl.BlockSpec((NUM_CLASSES, 1), lambda i: (0, 0)),            # bias   (resident)
            pl.BlockSpec((IN_FEATURES, tb), lambda i: (0, i)),           # z tile
        ],
        out_specs=pl.BlockSpec((NUM_CLASSES, tb), lambda i: (0, i)),
        compiler_params=pltpu.CompilerParams(
            dimension_semantics=("parallel",),   # shards the batch axis over v7x's 2 TCs
        ),
    )(w, b2, z_t)


def classifier_forward(z, weight, bias):
    """PyTorch-layout entry point: z (B, 24) -> logits (B, 10) f32.

    Pure layout plumbing around the lane-dense kernel (transpose in / transpose out).
    """
    return classifier_forward_t(z.T, weight, bias).T


def init_params(key):
    """Deterministic init matching nn.Linear(24, 10) shapes (Kaiming-uniform-ish)."""
    kw, kb = jax.random.split(key)
    bound = 1.0 / (IN_FEATURES ** 0.5)
    weight = jax.random.uniform(
        kw, (NUM_CLASSES, IN_FEATURES), jnp.float32, -bound, bound
    )
    bias = jax.random.uniform(kb, (NUM_CLASSES,), jnp.float32, -bound, bound)
    return weight, bias


if __name__ == "__main__":
    key = jax.random.PRNGKey(0)
    k_param, k1, k2, k3 = jax.random.split(key, 4)
    weight, bias = init_params(k_param)
    HI = jax.lax.Precision.HIGHEST

    # Case 1: tiny batch, PyTorch (B, 24) interface, single block grid.
    z_small = jax.random.normal(k1, (2, IN_FEATURES), jnp.float32)
    out_small = jax.block_until_ready(classifier_forward(z_small, weight, bias))
    ref_small = jnp.dot(z_small, weight.T, precision=HI) + bias
    assert out_small.shape == (2, NUM_CLASSES)
    assert jnp.allclose(out_small, ref_small, atol=1e-4, rtol=1e-4), "small-batch mismatch"

    # Case 2: tiled multi-step grid (B=8192 -> 4 grid steps), batch-in-lanes layout.
    B2 = 8192
    z_t = jax.random.normal(k2, (IN_FEATURES, B2), jnp.float32)
    out_t = jax.block_until_ready(classifier_forward_t(z_t, weight, bias))
    ref_t = jnp.dot(weight, z_t, precision=HI) + bias.reshape(-1, 1)
    assert out_t.shape == (NUM_CLASSES, B2)
    assert jnp.allclose(out_t, ref_t, atol=1e-4, rtol=1e-4), "tiled-batch mismatch"

    # Case 3: non-divisible tail (B=2648 -> grid=2, last block partially valid).
    B3 = 2048 + 600
    z3 = jax.random.normal(k3, (IN_FEATURES, B3), jnp.float32)
    out3 = jax.block_until_ready(classifier_forward_t(z3, weight, bias))
    ref3 = jnp.dot(weight, z3, precision=HI) + bias.reshape(-1, 1)
    assert out3.shape == (NUM_CLASSES, B3)
    assert jnp.allclose(out3, ref3, atol=1e-4, rtol=1e-4), "tail-block mismatch"

    # Case 4: bf16 activations (halves HBM bytes), f32 accumulation, f32 output.
    z_bf = z_t.astype(jnp.bfloat16)
    out_bf = jax.block_until_ready(classifier_forward_t(z_bf, weight, bias))
    w_bf32 = weight.astype(jnp.bfloat16).astype(jnp.float32)
    ref_bf = jnp.dot(w_bf32, z_bf.astype(jnp.float32), precision=HI) + bias.reshape(-1, 1)
    assert out_bf.dtype == jnp.float32
    assert jnp.allclose(out_bf, ref_bf, atol=5e-2, rtol=5e-2), "bf16 mismatch"

    print("KERNEL_OK")
</pallas_src>

<mosaic_0001>
module attributes {stable_mosaic.version = 11 : i64} {
  func.func @_linear_t_kernel(%arg0: i32, %arg1: memref<10x24xf32, #tpu.memory_space<vmem>>, %arg2: memref<10x1xf32, #tpu.memory_space<vmem>>, %arg3: memref<24x2xf32, #tpu.memory_space<vmem>>, %arg4: memref<10x2xf32, #tpu.memory_space<vmem>>) attributes {dimension_semantics = [#tpu.dimension_semantics<parallel>], iteration_bounds = array<i64: 1>, scalar_prefetch = 0 : i64, scratch_operands = 0 : i64, tpu.core_type = #tpu.core_type<tc>, window_params = [{pipeline_mode = #tpu.pipeline_mode<synchronous>, transform_indices = @transform_0, window_bounds = array<i64: 10, 24>}, {pipeline_mode = #tpu.pipeline_mode<synchronous>, transform_indices = @transform_1, window_bounds = array<i64: 10, 1>}, {transform_indices = @transform_2, window_bounds = array<i64: 24, 2>}, {transform_indices = @transform_3, window_bounds = array<i64: 10, 2>}]} {
    %c0 = arith.constant 0 : index
    %c0_0 = arith.constant 0 : index
    %0 = vector.load %arg1[%c0, %c0_0] : memref<10x24xf32, #tpu.memory_space<vmem>>, vector<10x24xf32>
    %c0_1 = arith.constant 0 : index
    %c0_2 = arith.constant 0 : index
    %1 = vector.load %arg3[%c0_1, %c0_2] : memref<24x2xf32, #tpu.memory_space<vmem>>, vector<24x2xf32>
    %cst = arith.constant dense<0.000000e+00> : vector<10x2xf32>
    %2 = tpu.matmul %0, %1, %cst {dimension_numbers = #tpu.dot_dimension_numbers<[1], [0], [0], [1], [0, 0, 1, 1], [], []>} : vector<10x24xf32>, vector<24x2xf32>, vector<10x2xf32> -> vector<10x2xf32>
    %c0_3 = arith.constant 0 : index
    %c0_4 = arith.constant 0 : index
    %3 = vector.load %arg2[%c0_3, %c0_4] : memref<10x1xf32, #tpu.memory_space<vmem>>, vector<10x1xf32>
    %4 = vector.broadcast %3 : vector<10x1xf32> to vector<10x2xf32>
    %5 = arith.addf %2, %4 : vector<10x2xf32>
    %c0_5 = arith.constant 0 : index
    %c0_6 = arith.constant 0 : index
    %6 = vector.load %arg4[%c0_5, %c0_6] : memref<10x2xf32, #tpu.memory_space<vmem>>, vector<10x2xf32>
    tpu.vector_store %arg4[%c0_5, %c0_6], %5 {strides = array<i32>} : memref<10x2xf32, #tpu.memory_space<vmem>>, vector<10x2xf32>,
    return
  }
  func.func @transform_0(%arg0: i32) -> (i32, i32) {
    %c0_i32 = arith.constant 0 : i32
    %c0_i32_0 = arith.constant 0 : i32
    %c0_i32_1 = arith.constant 0 : i32
    return %c0_i32, %c0_i32_0 : i32, i32
  }
  func.func @transform_1(%arg0: i32) -> (i32, i32) {
    %c0_i32 = arith.constant 0 : i32
    %c0_i32_0 = arith.constant 0 : i32
    %c0_i32_1 = arith.constant 0 : i32
    return %c0_i32, %c0_i32_0 : i32, i32
  }
  func.func @transform_2(%arg0: i32) -> (i32, i32) {
    %c0_i32 = arith.constant 0 : i32
    %c0_i32_0 = arith.constant 0 : i32
    return %c0_i32, %arg0 : i32, i32
  }
  func.func @transform_3(%arg0: i32) -> (i32, i32) {
    %c0_i32 = arith.constant 0 : i32
    %c0_i32_0 = arith.constant 0 : i32
    return %c0_i32, %arg0 : i32, i32
  }
}

</mosaic_0001>

<llo_original>
// kernel: tpu_custom_call.1
$region0: #{tpu_custom_call.1}
  #allocation0 [shape = 'u32[]', space=smem, size = 0x4, offset = 0x4, fixed_abs, tag = 'smem constant byte address 0x4 - core index']
  #allocation1 [shape = 'u32[144,128]{1,0:T(1,128)}', space=vmem, size = 0x12000, scoped, tag = 'internal scratch']
  %s0 = inlined_call_operand.vmem [shape: f32[10,24], index: 0, kind: input, shape index: {}]
  %s1 = inlined_call_operand.vmem [shape: f32[10,1], index: 1, kind: input, shape index: {}]
  %s2 = inlined_call_operand.vmem [shape: f32[24,2], index: 2, kind: input, shape index: {}]
  %s3 = inlined_call_operand.vmem [shape: f32[10,2], index: 3, kind: output, shape index: {}]
  %s4 = sld [smem:[#allocation0]]
  $region22: #{tpu_custom_call.1} parent=0
    _
  %s6 = ssub.s32 1, %s4
  %s7 = scalar_select 0, %s6, %s4
  // Predicated region
  $region2: #{tpu_custom_call.1} parent=0 // pred_check
    _
  $region3: #{tpu_custom_call.1} parent=0 // pred_check_branch
    %9 = sbr.rel (0) target = $region5
  $region4: #{tpu_custom_call.1} parent=0 // pred_region
    _
  $region5: #{tpu_custom_call.1} parent=0 // pred_fallthru
    _
  // Predicated region
  $region6: #{tpu_custom_call.1} parent=0 // pred_check
    _
  $region7: #{tpu_custom_call.1} parent=0 // pred_check_branch
    %11 = sbr.rel (0) target = $region9
  $region8: #{tpu_custom_call.1} parent=0 // pred_region
    _
  $region9: #{tpu_custom_call.1} parent=0 // pred_fallthru
    _
  // Predicated region
  $region10: #{tpu_custom_call.1} parent=0 // pred_check
    _
  $region11: #{tpu_custom_call.1} parent=0 // pred_check_branch
    %13 = sbr.rel (0) target = $region13
  $region12: #{tpu_custom_call.1} parent=0 // pred_region
    _
  $region13: #{tpu_custom_call.1} parent=0 // pred_fallthru
    _
  %v14 = vld [vmem:[%s0] sm:$0xff]
  %v15 = vld [vmem:[%s0 + $0x8] sm:$0x3]
  %v16 = vld [vmem:[%s2] sm:$0xff]
  %v17 = vld [vmem:[%s2 + $0x8] sm:$0xff]
  %v18 = vld [vmem:[%s2 + $0x10] sm:$0xff]
  %v19 = vld [vmem:[%s1] sm:$0xff]
  %v20 = vld [vmem:[%s1 + $0x8] sm:$0x3]
  %22 = vset.pattern.permute.xlu0 0
  %23 = vperm.xlu0 %22, %v19
  %v24 = vpop.permute.xlu0 %23
  %27 = vset.pattern.permute.xlu0 0
  %28 = vperm.xlu0 %27, %v20
  %v29 = vpop.permute.xlu0 %28
  %vm31 = vcmask 195584
  %v33 = vsel %vm31, %v14, 0
  %v36 = vsel %vm31, %v15, 0
  %38 = vmatprep.subr.mxu0 0.0
  %39 = vmatpush1.msra.mxu0 %v16
  %40 = vmatprep.subr.mxu0 0.0
  %41 = vmatpush1.msra.mxu0 %v17
  %42 = vmatprep.subr.mxu0 0.0
  %43 = vmatpush1.msra.mxu0 %v18
  %44 = vmatprep.subr.mxu0 0.0
  %45 = vmatpush1.msra.mxu0 0.0
  %46 = vmatprep.subr.mxu0 0.0
  %47 = vmatpush1.msra.mxu0 0.0
  %48 = vmatprep.subr.mxu0 0.0
  %49 = vmatpush1.msra.mxu0 0.0
  %50 = vmatprep.subr.mxu0 0.0
  %51 = vmatpush1.msra.mxu0 0.0
  %52 = vmatprep.subr.mxu0 0.0
  %53 = vmatpush1.msra.mxu0 0.0
  %54 = vmatprep.subr.mxu0 0.0
  %55 = vmatpush1.msra.mxu0 0.0
  %56 = vmatprep.subr.mxu0 0.0
  %57 = vmatpush1.msra.mxu0 0.0
  %58 = vmatprep.subr.mxu0 0.0
  %59 = vmatpush1.msra.mxu0 0.0
  %60 = vmatprep.subr.mxu0 0.0
  %61 = vmatpush1.msra.mxu0 0.0
  %62 = vmatprep.subr.mxu0 0.0
  %63 = vmatpush1.msra.mxu0 0.0
  %64 = vmatprep.subr.mxu0 0.0
  %65 = vmatpush1.msra.mxu0 0.0
  %66 = vmatprep.subr.mxu0 0.0
  %67 = vmatpush1.msra.mxu0 0.0
  %68 = vmatprep.subr.mxu0 0.0
  %69 = vmatpush1.msra.mxu0 0.0
  %70 = vmatprep.subr.mxu0 0.0
  %71 = vmatpush1.msra.mxu0 0.0
  %72 = vmatprep.subr.mxu0 0.0
  %73 = vmatpush1.msra.mxu0 0.0
  %74 = vmatprep.subr.mxu0 0.0
  %75 = vmatpush1.msra.mxu0 0.0
  %76 = vmatprep.subr.mxu0 0.0
  %77 = vmatpush1.msra.mxu0 0.0
  %78 = vmatprep.subr.mxu0 0.0
  %79 = vmatpush1.msra.mxu0 0.0
  %80 = vmatprep.subr.mxu0 0.0
  %81 = vmatpush1.msra.mxu0 0.0
  %82 = vmatprep.subr.mxu0 0.0
  %83 = vmatpush1.msra.mxu0 0.0
  %84 = vmatprep.subr.mxu0 0.0
  %85 = vmatpush1.msra.mxu0 0.0
  %86 = vmatprep.subr.mxu0 0.0
  %87 = vmatpush1.msra.mxu0 0.0
  %88 = vmatprep.subr.mxu0 0.0
  %89 = vmatpush1.msra.mxu0 0.0
  %90 = vmatprep.subr.mxu0 0.0
  %91 = vmatpush1.msra.mxu0 0.0
  %92 = vmatprep.subr.mxu0 0.0
  %93 = vmatpush1.msra.mxu0 0.0
  %94 = vmatprep.subr.mxu0 0.0
  %95 = vmatpush1.msra.mxu0 0.0
  %96 = vmatprep.subr.mxu0 0.0
  %97 = vmatpush1.msra.mxu0 0.0
  %98 = vmatprep.subr.mxu0 0.0
  %99 = vmatpush1.msra.mxu0 0.0
  %100 = vmatprep.subr.mxu0 0.0
  %101 = vmatpush1.msra.mxu0 0.0
  %102 = vmatprep.mubr.f32.mxu0 0.0
  %103 = vmatmul.mubr.f32.gmra.mrb[0].mxu0 %v33
  %v104 = vpop.f32.mrb[0].mxu0
  %v105 = vadd.f32 %v24, %v104
  %v106 = vpop.f32.mrb[0].mxu0
  %107 = vmatprep.mubr.f32.mxu0 0.0
  %108 = vmatmul.mubr.f32.gmra.mrb[0].mxu0 %v36
  %v109 = vpop.f32.mrb[0].mxu0
  %v110 = vadd.f32 %v29, %v109
  %v111 = vpop.f32.mrb[0].mxu0
  %112 = vdwg.mxu0
  %vm113 = vcmask 15360
  %114 = vst.msk [vmem:[%s3] sm:$0xff] %vm113, %v105
  %vm115 = vcmask 9216
  %116 = vst.msk [vmem:[%s3 + $0x8] sm:$0x3] %vm115, %v110
  // Predicated region
  $region14: #{tpu_custom_call.1} parent=0 // pred_check
    _
  $region15: #{tpu_custom_call.1} parent=0 // pred_check_branch
    %118 = sbr.rel (0) target = $region17
  $region16: #{tpu_custom_call.1} parent=0 // pred_region
    _
  $region17: #{tpu_custom_call.1} parent=0 // pred_fallthru
    _
  // Predicated region
  $region18: #{tpu_custom_call.1} parent=0 // pred_check
    _
  $region19: #{tpu_custom_call.1} parent=0 // pred_check_branch
    %120 = sbr.rel (0) target = $region21
  $region20: #{tpu_custom_call.1} parent=0 // pred_region
    _
  $region21: #{tpu_custom_call.1} parent=0 // pred_fallthru
    _

</llo_original>
